<compile_context>
chip_gen: v6e
topology: v6e:2x2x1
jax: 0.10.0
libtpu: 0.0.40
codegen_flags: <defaults>
</compile_context>

<pallas_src>
import jax
import jax.numpy as jnp
import numpy as np
from jax.experimental import pallas as pl
from jax.experimental.pallas import tpu as pltpu


def _attention_kernel(len_ref,    # VMEM (Bt, 1)   int32
                      hid_ref,    # VMEM (Bt, Dd)  stream dtype
                      enc_ref,    # VMEM (Bt, S, De) stream dtype
                      whT_ref,    # VMEM (Dd, Dd)  = W[:, :Dd].T, stream dtype
                      weT_ref,    # VMEM (De, Dd)  = W[:, Dd:].T, stream dtype
                      b_ref,      # VMEM (1, Dd)   f32
                      v_ref,      # VMEM (1, Dd)   f32
                      ctx_ref,    # VMEM (Bt, De)  out f32
                      attn_ref):  # VMEM (Bt, S)   out f32
    Bt, S, De = enc_ref.shape
    Dd = hid_ref.shape[1]

    enc = enc_ref[...]                                     # keep stream dtype (no f32 copy)

    # energy = tanh([h_rep ; enc] @ W^T + bias), split into the hidden part
    # (broadcast over S) and the encoder part.  Both are plain A @ B on the
    # MXU (weights pre-transposed in the wrapper), bf16 in / f32 accumulate.
    hp = jnp.dot(hid_ref[...], whT_ref[...],
                 preferred_element_type=jnp.float32)                          # (Bt, Dd)
    ep = jnp.dot(enc.reshape(Bt * S, De), weT_ref[...],
                 preferred_element_type=jnp.float32)                          # (Bt*S, Dd)
    # TODO(synk): on v6e/v7x the tanh could run in bf16 (2x EUP rate); kept f32
    # so the same kernel is numerically safe on v5e.
    energy = jnp.tanh(ep.reshape(Bt, S, Dd) + hp[:, None, :] + b_ref[...])    # (Bt, S, Dd) f32

    # score[b, s] = energy[b, s, :] . v  -- VPU multiply against the lane-dense
    # (1, Dd) v, then a lane reduce on the XLU (avoids an N=1 MXU matmul).
    score = jnp.sum(energy * v_ref[...], axis=-1)                             # (Bt, S) f32

    # Mask positions >= src_lengths[b] with -1e10, softmax over S (lane axis).
    pos = jax.lax.broadcasted_iota(jnp.int32, (Bt, S), 1)
    score = jnp.where(pos < len_ref[...], score, jnp.float32(-1e10))
    m = jnp.max(score, axis=-1, keepdims=True)
    p = jnp.exp(score - m)
    w = p / jnp.sum(p, axis=-1, keepdims=True)                                # (Bt, S) f32

    # context[b] = sum_s w[b, s] * enc[b, s, :] -- VPU multiply (f32 x bf16
    # promotes to f32) + sublane reduce; avoids Bt tiny M=1 MXU matmuls.
    ctx = jnp.sum(w[:, :, None] * enc, axis=1)                                # (Bt, De) f32

    attn_ref[...] = w.astype(attn_ref.dtype)
    ctx_ref[...] = ctx.astype(ctx_ref.dtype)


def attention_module(hidden, encoder_outputs, src_lengths, W, bias, v,
                     *, stream_dtype=jnp.bfloat16, block_b=256):
    """hidden: (L, B, Dd), encoder_outputs: (B, S, De), src_lengths: (B,) int.
    W: (Dd, Dd+De) Linear weight (cat order = [hidden, encoder_outputs]),
    bias: (Dd,), v: (Dd,).
    Returns (context (B, 1, De) f32, attention_weights (B, S) f32)."""
    B, S, De = encoder_outputs.shape
    Dd = hidden.shape[-1]

    h_last = hidden[-1]                                    # (B, Dd)
    lens = src_lengths.astype(jnp.int32).reshape(B, 1)     # (B, 1)

    # Stream the big tensors (and the resident weights) in a narrow dtype.
    # For f32 callers inside jit this cast typically fuses with the producer;
    # pass stream_dtype=None to keep the input dtype unchanged.
    if stream_dtype is not None:
        h_last = h_last.astype(stream_dtype)
        encoder_outputs = encoder_outputs.astype(stream_dtype)
    sdt = encoder_outputs.dtype
    esize = jnp.dtype(sdt).itemsize

    # Pre-transpose the weights once so the kernel does plain A @ B.
    WhT = W[:, :Dd].T.astype(sdt)                          # (Dd, Dd)
    WeT = W[:, Dd:].T.astype(sdt)                          # (De, Dd)
    b2 = bias.astype(jnp.float32).reshape(1, Dd)           # (1, Dd)
    v2 = v.astype(jnp.float32).reshape(1, Dd)              # (1, Dd)  lane-dense

    # ---- VMEM budget -> per-chip vmem limit and batch tile -------------------
    try:
        info = pltpu.get_tpu_info()
        vmem_cap = int(getattr(info, "vmem_capacity_bytes", 64 << 20))
    except Exception:
        vmem_cap = 64 << 20                                # conservative (v7x-sized)
    vmem_limit = int(min(int(vmem_cap * 0.8), 100 << 20))  # ~51MiB v7x, ~100MiB v5e/v6e
    vmem_limit = max(vmem_limit, 32 << 20)

    resident = 2 * (Dd * Dd + De * Dd) * esize + 4 * (2 * Dd + 2 * De) + (1 << 20)
    per_row = (2 * S * De * esize          # double-buffered enc tile (stream dtype)
               + 2 * S * Dd * 4            # ep / energy (f32)
               + 1 * S * De * 4            # w*enc product (f32)
               + 10 * S * 4                # score / mask / softmax temps + attn out
               + 4 * (2 * Dd + 2 * De))    # hidden row / hp / ctx rows
    budget = max(vmem_limit - resident, 8 * per_row)
    max_bt = max(budget // per_row, 8)

    if B <= max_bt:
        bt = B
        # When it is free, keep >=2 grid steps so the "parallel" axis can shard
        # across the two TensorCores on v7x (no effect on v5e/v6e).
        if B >= 16 and B % 16 == 0 and (B // 2) <= max_bt:
            bt = B // 2
    else:
        bt = (int(min(max_bt, block_b)) // 8) * 8
        bt = max(bt, 8)
    n_blocks = pl.cdiv(B, bt)
    # Note: no jnp.pad of the big arrays.  If B % bt != 0, Pallas handles the
    # ragged trailing block; its out-of-range rows read stale data but their
    # outputs are dropped on the (clipped) write, so results are unaffected.

    grid_spec = pltpu.PrefetchScalarGridSpec(
        num_scalar_prefetch=0,
        grid=(n_blocks,),
        in_specs=[
            pl.BlockSpec((bt, 1), lambda i: (i, 0)),         # src lengths
            pl.BlockSpec((bt, Dd), lambda i: (i, 0)),        # hidden[-1]
            pl.BlockSpec((bt, S, De), lambda i: (i, 0, 0)),  # encoder outputs
            pl.BlockSpec((Dd, Dd), lambda i: (0, 0)),        # W_h^T (resident)
            pl.BlockSpec((De, Dd), lambda i: (0, 0)),        # W_e^T (resident)
            pl.BlockSpec((1, Dd), lambda i: (0, 0)),         # bias
            pl.BlockSpec((1, Dd), lambda i: (0, 0)),         # v (lane-dense)
        ],
        out_specs=[
            pl.BlockSpec((bt, De), lambda i: (i, 0)),        # context (lane-dense)
            pl.BlockSpec((bt, S), lambda i: (i, 0)),         # attn weights
        ],
    )

    ctx, attn = pl.pallas_call(
        _attention_kernel,
        grid_spec=grid_spec,
        out_shape=(
            jax.ShapeDtypeStruct((B, De), jnp.float32),
            jax.ShapeDtypeStruct((B, S), jnp.float32),
        ),
        compiler_params=pltpu.CompilerParams(
            dimension_semantics=("parallel",),
            vmem_limit_bytes=vmem_limit),
    )(lens, h_last, encoder_outputs, WhT, WeT, b2, v2)

    return ctx[:, None, :], attn


def _reference(hidden, encoder_outputs, src_lengths, W, bias, v):
    h = hidden[-1].astype(jnp.float32)
    enc = encoder_outputs.astype(jnp.float32)
    S = enc.shape[1]
    h_rep = jnp.repeat(h[:, None, :], S, axis=1)
    cat = jnp.concatenate([h_rep, enc], axis=2)
    energy = jnp.tanh(cat @ W.astype(jnp.float32).T + bias)
    score = jnp.einsum('bsh,h->bs', energy, v)
    mask = jnp.arange(S)[None, :] >= src_lengths[:, None]
    score = jnp.where(mask, jnp.float32(-1e10), score)
    w = jax.nn.softmax(score, axis=1)
    ctx = jnp.einsum('bs,bse->be', w, enc)[:, None, :]
    return ctx, w


if __name__ == "__main__":
    B, S = 2, 8
    enc_dim, dec_dim = 32, 32
    n_layers = 2

    key = jax.random.PRNGKey(0)
    k_h, k_e, k_w, k_b, k_v = jax.random.split(key, 5)

    hidden = jax.random.normal(k_h, (n_layers, B, dec_dim), dtype=jnp.float32)
    encoder_outputs = jax.random.normal(k_e, (B, S, enc_dim), dtype=jnp.float32)
    src_lengths = jnp.array([5, 8], dtype=jnp.int32)

    # nn.Linear(enc_dim + dec_dim, dec_dim): weight (dec_dim, enc_dim + dec_dim)
    W = (jax.random.uniform(k_w, (dec_dim, enc_dim + dec_dim), dtype=jnp.float32)
         - 0.5) * 0.2
    bias = (jax.random.uniform(k_b, (dec_dim,), dtype=jnp.float32) - 0.5) * 0.2
    v = jax.random.uniform(k_v, (dec_dim,), dtype=jnp.float32)   # torch.rand

    ctx, attn = attention_module(hidden, encoder_outputs, src_lengths, W, bias, v)
    jax.block_until_ready((ctx, attn))

    # 1) Kernel-logic check: reference evaluated on the same bf16-rounded
    #    operands the kernel streams -> tight tolerance.
    hid_q = hidden.astype(jnp.bfloat16).astype(jnp.float32)
    enc_q = encoder_outputs.astype(jnp.bfloat16).astype(jnp.float32)
    W_q = W.astype(jnp.bfloat16).astype(jnp.float32)
    ctx_q, attn_q = _reference(hid_q, enc_q, src_lengths, W_q, bias, v)
    np.testing.assert_allclose(np.asarray(ctx), np.asarray(ctx_q), rtol=2e-3, atol=2e-3)
    np.testing.assert_allclose(np.asarray(attn), np.asarray(attn_q), rtol=2e-3, atol=2e-3)

    # 2) End-to-end vs the full-f32 spec (budget for the intentional bf16 streaming).
    ctx_f, attn_f = _reference(hidden, encoder_outputs, src_lengths, W, bias, v)
    np.testing.assert_allclose(np.asarray(ctx), np.asarray(ctx_f), rtol=5e-2, atol=5e-2)
    np.testing.assert_allclose(np.asarray(attn), np.asarray(attn_f), rtol=5e-2, atol=5e-2)

    print("KERNEL_OK")
</pallas_src>

<mosaic_0001>
module attributes {stable_mosaic.version = 11 : i64} {
  func.func @_attention_kernel(%arg0: i32, %arg1: memref<2x1xi32, #tpu.memory_space<vmem>>, %arg2: memref<2x32xbf16, #tpu.memory_space<vmem>>, %arg3: memref<2x8x32xbf16, #tpu.memory_space<vmem>>, %arg4: memref<32x32xbf16, #tpu.memory_space<vmem>>, %arg5: memref<32x32xbf16, #tpu.memory_space<vmem>>, %arg6: memref<1x32xf32, #tpu.memory_space<vmem>>, %arg7: memref<1x32xf32, #tpu.memory_space<vmem>>, %arg8: memref<2x32xf32, #tpu.memory_space<vmem>>, %arg9: memref<2x8xf32, #tpu.memory_space<vmem>>) attributes {dimension_semantics = [#tpu.dimension_semantics<parallel>], iteration_bounds = array<i64: 1>, scalar_prefetch = 0 : i64, scratch_operands = 0 : i64, tpu.core_type = #tpu.core_type<tc>, window_params = [{transform_indices = @transform_0, window_bounds = array<i64: 2, 1>}, {transform_indices = @transform_1, window_bounds = array<i64: 2, 32>}, {transform_indices = @transform_2, window_bounds = array<i64: 2, 8, 32>}, {pipeline_mode = #tpu.pipeline_mode<synchronous>, transform_indices = @transform_3, window_bounds = array<i64: 32, 32>}, {pipeline_mode = #tpu.pipeline_mode<synchronous>, transform_indices = @transform_4, window_bounds = array<i64: 32, 32>}, {pipeline_mode = #tpu.pipeline_mode<synchronous>, transform_indices = @transform_5, window_bounds = array<i64: 1, 32>}, {pipeline_mode = #tpu.pipeline_mode<synchronous>, transform_indices = @transform_6, window_bounds = array<i64: 1, 32>}, {transform_indices = @transform_7, window_bounds = array<i64: 2, 32>}, {transform_indices = @transform_8, window_bounds = array<i64: 2, 8>}]} {
    %c0 = arith.constant 0 : index
    %c0_0 = arith.constant 0 : index
    %c0_1 = arith.constant 0 : index
    %0 = vector.load %arg3[%c0, %c0_0, %c0_1] : memref<2x8x32xbf16, #tpu.memory_space<vmem>>, vector<2x8x32xbf16>
    %c0_2 = arith.constant 0 : index
    %c0_3 = arith.constant 0 : index
    %1 = vector.load %arg2[%c0_2, %c0_3] : memref<2x32xbf16, #tpu.memory_space<vmem>>, vector<2x32xbf16>
    %c0_4 = arith.constant 0 : index
    %c0_5 = arith.constant 0 : index
    %2 = vector.load %arg4[%c0_4, %c0_5] : memref<32x32xbf16, #tpu.memory_space<vmem>>, vector<32x32xbf16>
    %cst = arith.constant dense<0.000000e+00> : vector<2x32xf32>
    %3 = tpu.matmul %1, %2, %cst {dimension_numbers = #tpu.dot_dimension_numbers<[1], [0], [0], [1], [0, 0, 1, 1], [], []>} : vector<2x32xbf16>, vector<32x32xbf16>, vector<2x32xf32> -> vector<2x32xf32>
    %4 = vector.shape_cast %0 : vector<2x8x32xbf16> to vector<16x32xbf16>
    %c0_6 = arith.constant 0 : index
    %c0_7 = arith.constant 0 : index
    %5 = vector.load %arg5[%c0_6, %c0_7] : memref<32x32xbf16, #tpu.memory_space<vmem>>, vector<32x32xbf16>
    %cst_8 = arith.constant dense<0.000000e+00> : vector<16x32xf32>
    %6 = tpu.matmul %4, %5, %cst_8 {dimension_numbers = #tpu.dot_dimension_numbers<[1], [0], [0], [1], [0, 0, 1, 1], [], []>} : vector<16x32xbf16>, vector<32x32xbf16>, vector<16x32xf32> -> vector<16x32xf32>
    %7 = vector.shape_cast %6 : vector<16x32xf32> to vector<2x8x32xf32>
    %8 = vector.shape_cast %3 : vector<2x32xf32> to vector<2x1x32xf32>
    %9 = vector.broadcast %8 : vector<2x1x32xf32> to vector<2x8x32xf32>
    %10 = arith.addf %7, %9 : vector<2x8x32xf32>
    %c0_9 = arith.constant 0 : index
    %c0_10 = arith.constant 0 : index
    %11 = vector.load %arg6[%c0_9, %c0_10] : memref<1x32xf32, #tpu.memory_space<vmem>>, vector<1x32xf32>
    %12 = vector.shape_cast %11 : vector<1x32xf32> to vector<1x1x32xf32>
    %13 = vector.broadcast %12 : vector<1x1x32xf32> to vector<2x8x32xf32>
    %14 = arith.addf %10, %13 : vector<2x8x32xf32>
    %15 = math.tanh %14 : vector<2x8x32xf32>
    %c0_11 = arith.constant 0 : index
    %c0_12 = arith.constant 0 : index
    %16 = vector.load %arg7[%c0_11, %c0_12] : memref<1x32xf32, #tpu.memory_space<vmem>>, vector<1x32xf32>
    %17 = vector.shape_cast %16 : vector<1x32xf32> to vector<1x1x32xf32>
    %18 = vector.broadcast %17 : vector<1x1x32xf32> to vector<2x8x32xf32>
    %19 = arith.mulf %15, %18 : vector<2x8x32xf32>
    %cst_13 = arith.constant dense<0.000000e+00> : vector<2x8xf32>
    %20 = vector.multi_reduction <add>, %19, %cst_13 [2] : vector<2x8x32xf32> to vector<2x8xf32>
    %21 = tpu.iota {dimensions = array<i32: 1>} : vector<2x8xi32>
    %c0_14 = arith.constant 0 : index
    %c0_15 = arith.constant 0 : index
    %22 = vector.load %arg1[%c0_14, %c0_15] : memref<2x1xi32, #tpu.memory_space<vmem>>, vector<2x1xi32>
    %23 = vector.broadcast %22 : vector<2x1xi32> to vector<2x8xi32>
    %24 = arith.cmpi slt, %21, %23 : vector<2x8xi32>
    %cst_16 = arith.constant -1.000000e+10 : f32
    %25 = vector.broadcast %cst_16 : f32 to vector<2x8xf32>
    %26 = arith.select %24, %20, %25 : vector<2x8xi1>, vector<2x8xf32>
    %cst_17 = arith.constant dense<0xFF800000> : vector<2xf32>
    %27 = vector.multi_reduction <maximumf>, %26, %cst_17 [1] : vector<2x8xf32> to vector<2xf32>
    %28 = vector.shape_cast %27 : vector<2xf32> to vector<2x1xf32>
    %29 = vector.broadcast %28 : vector<2x1xf32> to vector<2x8xf32>
    %30 = arith.subf %26, %29 : vector<2x8xf32>
    %31 = math.exp %30 : vector<2x8xf32>
    %cst_18 = arith.constant dense<0.000000e+00> : vector<2xf32>
    %32 = vector.multi_reduction <add>, %31, %cst_18 [1] : vector<2x8xf32> to vector<2xf32>
    %33 = vector.shape_cast %32 : vector<2xf32> to vector<2x1xf32>
    %34 = vector.broadcast %33 : vector<2x1xf32> to vector<2x8xf32>
    %35 = arith.divf %31, %34 : vector<2x8xf32>
    %36 = vector.shape_cast %35 : vector<2x8xf32> to vector<2x8x1xf32>
    %37 = arith.extf %0 : vector<2x8x32xbf16> to vector<2x8x32xf32>
    %38 = vector.broadcast %36 : vector<2x8x1xf32> to vector<2x8x32xf32>
    %39 = arith.mulf %38, %37 : vector<2x8x32xf32>
    %cst_19 = arith.constant dense<0.000000e+00> : vector<2x32xf32>
    %40 = vector.multi_reduction <add>, %39, %cst_19 [1] : vector<2x8x32xf32> to vector<2x32xf32>
    %c0_20 = arith.constant 0 : index
    %c0_21 = arith.constant 0 : index
    %41 = vector.load %arg9[%c0_20, %c0_21] : memref<2x8xf32, #tpu.memory_space<vmem>>, vector<2x8xf32>
    tpu.vector_store %arg9[%c0_20, %c0_21], %35 {strides = array<i32>} : memref<2x8xf32, #tpu.memory_space<vmem>>, vector<2x8xf32>,
    %c0_22 = arith.constant 0 : index
    %c0_23 = arith.constant 0 : index
    %42 = vector.load %arg8[%c0_22, %c0_23] : memref<2x32xf32, #tpu.memory_space<vmem>>, vector<2x32xf32>
    tpu.vector_store %arg8[%c0_22, %c0_23], %40 {strides = array<i32>} : memref<2x32xf32, #tpu.memory_space<vmem>>, vector<2x32xf32>,
    return
  }
  func.func @transform_0(%arg0: i32) -> (i32, i32) {
    %c0_i32 = arith.constant 0 : i32
    %c0_i32_0 = arith.constant 0 : i32
    return %arg0, %c0_i32 : i32, i32
  }
  func.func @transform_1(%arg0: i32) -> (i32, i32) {
    %c0_i32 = arith.constant 0 : i32
    %c0_i32_0 = arith.constant 0 : i32
    return %arg0, %c0_i32 : i32, i32
  }
  func.func @transform_2(%arg0: i32) -> (i32, i32, i32) {
    %c0_i32 = arith.constant 0 : i32
    %c0_i32_0 = arith.constant 0 : i32
    %c0_i32_1 = arith.constant 0 : i32
    return %arg0, %c0_i32, %c0_i32_0 : i32, i32, i32
  }
  func.func @transform_3(%arg0: i32) -> (i32, i32) {
    %c0_i32 = arith.constant 0 : i32
    %c0_i32_0 = arith.constant 0 : i32
    %c0_i32_1 = arith.constant 0 : i32
    return %c0_i32, %c0_i32_0 : i32, i32
  }
  func.func @transform_4(%arg0: i32) -> (i32, i32) {
    %c0_i32 = arith.constant 0 : i32
    %c0_i32_0 = arith.constant 0 : i32
    %c0_i32_1 = arith.constant 0 : i32
    return %c0_i32, %c0_i32_0 : i32, i32
  }
  func.func @transform_5(%arg0: i32) -> (i32, i32) {
    %c0_i32 = arith.constant 0 : i32
    %c0_i32_0 = arith.constant 0 : i32
    %c0_i32_1 = arith.constant 0 : i32
    return %c0_i32, %c0_i32_0 : i32, i32
  }
  func.func @transform_6(%arg0: i32) -> (i32, i32) {
    %c0_i32 = arith.constant 0 : i32
    %c0_i32_0 = arith.constant 0 : i32
    %c0_i32_1 = arith.constant 0 : i32
    return %c0_i32, %c0_i32_0 : i32, i32
  }
  func.func @transform_7(%arg0: i32) -> (i32, i32) {
    %c0_i32 = arith.constant 0 : i32
    %c0_i32_0 = arith.constant 0 : i32
    return %arg0, %c0_i32 : i32, i32
  }
  func.func @transform_8(%arg0: i32) -> (i32, i32) {
    %c0_i32 = arith.constant 0 : i32
    %c0_i32_0 = arith.constant 0 : i32
    return %arg0, %c0_i32 : i32, i32
  }
}

</mosaic_0001>

<llo_original>
// kernel: tpu_custom_call.1
$region0: #{tpu_custom_call.1}
  #allocation0 [shape = 'u32[]', space=smem, size = 0x4, offset = 0x4, fixed_abs, tag = 'smem constant byte address 0x4 - core index']
  #allocation1 [shape = 'u32[144,128]{1,0:T(1,128)}', space=vmem, size = 0x12000, scoped, tag = 'internal scratch']
  %s0 = inlined_call_operand.vmem [shape: s32[2,1], index: 0, kind: input, shape index: {}]
  %s1 = inlined_call_operand.vmem [shape: bf16[2,32], index: 1, kind: input, shape index: {}]
  %s2 = inlined_call_operand.hbm [shape: bf16[2,8,32], index: 2, kind: input, shape index: {}]
  %s3 = inlined_call_operand.hbm [shape: bf16[32,32], index: 3, kind: input, shape index: {}]
  %s4 = inlined_call_operand.hbm [shape: bf16[32,32], index: 4, kind: input, shape index: {}]
  %s5 = inlined_call_operand.vmem [shape: f32[1,32], index: 5, kind: input, shape index: {}]
  %s6 = inlined_call_operand.vmem [shape: f32[1,32], index: 6, kind: input, shape index: {}]
  %s7 = inlined_call_operand.hbm [shape: f32[2,32], index: 7, kind: output, shape index: {0}]
  %s8 = inlined_call_operand.hbm [shape: f32[2,8], index: 8, kind: output, shape index: {1}]
  %9 = xla_tuple %s7, %s8
  %s10 = sld [smem:[#allocation0]]
  $region58: #{tpu_custom_call.1} parent=0
    _
  %s12 = ssub.s32 1, %s10
  %s13 = scalar_select 0, %s12, %s10
  $region1: #{tpu_custom_call.1} parent=0
    #allocation2 [shape = 'u8[4096]{0}', space=vmem, size = 0x1000, scoped, tag = 'input window, operand 2, single buffered']
    #allocation3 [shape = 's32[1]{0}', space=sflag, size = 0x4, scoped, tag = 'scoped memory for tpu_custom_call.1']
    #allocation4 [shape = 's32[1]{0}', space=sflag, size = 0x4, scoped, tag = 'scoped memory for tpu_custom_call.1']
    #allocation5 [shape = 'u8[8192]{0}', space=vmem, size = 0x2000, scoped, tag = 'input window, operand 3, single buffered']
    #allocation6 [shape = 's32[1]{0}', space=sflag, size = 0x4, scoped, tag = 'scoped memory for tpu_custom_call.1']
    #allocation7 [shape = 'u8[8192]{0}', space=vmem, size = 0x2000, scoped, tag = 'input window, operand 4, single buffered']
    #allocation8 [shape = 'u8[1024]{0}', space=vmem, size = 0x400, scoped, tag = 'output window, operand 0, single buffered']
    #allocation9 [shape = 'u8[1024]{0}', space=vmem, size = 0x400, scoped, tag = 'output window, operand 1, single buffered']
    #allocation10 [shape = 's32[1]{0}', space=sflag, size = 0x4, scoped, tag = 'scoped memory for tpu_custom_call.1']
    %14 = vsyncpa [#allocation3], 0
    %15 = vsyncpa [#allocation6], 0
    %16 = vsyncpa [#allocation4], 0
    %17 = vsyncpa [#allocation10], 0
    // Predicated region
    $region2: #{tpu_custom_call.1} parent=1 // pred_check
      _
    $region3: #{tpu_custom_call.1} parent=1 // pred_check_branch
      %19 = sbr.rel (0) target = $region5
    $region4: #{tpu_custom_call.1} parent=1 // pred_region
      _
    $region5: #{tpu_custom_call.1} parent=1 // pred_fallthru
      _
    // Predicated region
    $region6: #{tpu_custom_call.1} parent=1 // pred_check
      _
    $region7: #{tpu_custom_call.1} parent=1 // pred_check_branch
      %21 = sbr.rel (0) target = $region9
    $region8: #{tpu_custom_call.1} parent=1 // pred_region
      _
    $region9: #{tpu_custom_call.1} parent=1 // pred_fallthru
      _
    // Predicated region
    $region10: #{tpu_custom_call.1} parent=1 // pred_check
      _
    $region11: #{tpu_custom_call.1} parent=1 // pred_check_branch
      %23 = sbr.rel (0) target = $region13
    $region12: #{tpu_custom_call.1} parent=1 // pred_region
      %s25 = ssub.s32 128, 128
      %26 = vsyncadd [#allocation3], %s25
      %s27 = sshll.u32 [#allocation2], 4
      %s28 = int_to_ptr.vmem [resolvable:$true] %s27
      %33 = dma.hbm_to_vmem [thread:$0]  %s2, 128, %s28, [#allocation3], 64, 64, 4
    $region13: #{tpu_custom_call.1} parent=1 // pred_fallthru
      _
    // Predicated region
    $region14: #{tpu_custom_call.1} parent=1 // pred_check
      _
    $region15: #{tpu_custom_call.1} parent=1 // pred_check_branch
      %35 = sbr.rel (0) target = $region17
    $region16: #{tpu_custom_call.1} parent=1 // pred_region
      %s37 = ssub.s32 256, 256
      %38 = vsyncadd [#allocation6], %s37
      %s39 = sshll.u32 [#allocation5], 4
      %s40 = int_to_ptr.vmem [resolvable:$true] %s39
      %45 = dma.hbm_to_vmem [thread:$0]  %s3, 256, %s40, [#allocation6], 64, 64, 4
    $region17: #{tpu_custom_call.1} parent=1 // pred_fallthru
      _
    // Predicated region
    $region18: #{tpu_custom_call.1} parent=1 // pred_check
      _
    $region19: #{tpu_custom_call.1} parent=1 // pred_check_branch
      %47 = sbr.rel (0) target = $region21
    $region20: #{tpu_custom_call.1} parent=1 // pred_region
      %s49 = ssub.s32 256, 256
      %50 = vsyncadd [#allocation6], %s49
      %s51 = sshll.u32 [#allocation7], 4
      %s52 = int_to_ptr.vmem [resolvable:$true] %s51
      %57 = dma.hbm_to_vmem [thread:$0]  %s4, 256, %s52, [#allocation6], 64, 64, 4
    $region21: #{tpu_custom_call.1} parent=1 // pred_fallthru
      _
    // Predicated region
    $region22: #{tpu_custom_call.1} parent=1 // pred_check
      _
    $region23: #{tpu_custom_call.1} parent=1 // pred_check_branch
      %59 = sbr.rel (0) target = $region25
    $region24: #{tpu_custom_call.1} parent=1 // pred_region
      _
    $region25: #{tpu_custom_call.1} parent=1 // pred_fallthru
      _
    // Predicated region
    $region26: #{tpu_custom_call.1} parent=1 // pred_check
      _
    $region27: #{tpu_custom_call.1} parent=1 // pred_check_branch
      %61 = sbr.rel (0) target = $region29
    $region28: #{tpu_custom_call.1} parent=1 // pred_region
      _
    $region29: #{tpu_custom_call.1} parent=1 // pred_fallthru
      _
    // Predicated region
    $region30: #{tpu_custom_call.1} parent=1 // pred_check
      _
    $region31: #{tpu_custom_call.1} parent=1 // pred_check_branch
      %63 = sbr.rel (0) target = $region33
    $region32: #{tpu_custom_call.1} parent=1 // pred_region
      %64 = dma.done [#allocation3], 128
    $region33: #{tpu_custom_call.1} parent=1 // pred_fallthru
      _
    // Predicated region
    $region34: #{tpu_custom_call.1} parent=1 // pred_check
      _
    $region35: #{tpu_custom_call.1} parent=1 // pred_check_branch
      %66 = sbr.rel (0) target = $region37
    $region36: #{tpu_custom_call.1} parent=1 // pred_region
      %67 = dma.done [#allocation6], 256
    $region37: #{tpu_custom_call.1} parent=1 // pred_fallthru
      _
    // Predicated region
    $region38: #{tpu_custom_call.1} parent=1 // pred_check
      _
    $region39: #{tpu_custom_call.1} parent=1 // pred_check_branch
      %69 = sbr.rel (0) target = $region41
    $region40: #{tpu_custom_call.1} parent=1 // pred_region
      %70 = dma.done [#allocation6], 256
    $region41: #{tpu_custom_call.1} parent=1 // pred_fallthru
      _
    %v72 = vld [vmem:[#allocation2] sm:$0xf]
    %v73 = vld [vmem:[#allocation2 + $0x4] sm:$0xf]
    %v74 = vld [vmem:[%s1] sm:$0x1]
    %v75 = vld [vmem:[#allocation5] sm:$0xf]
    %v76 = vld [vmem:[#allocation5 + $0x4] sm:$0xf]
    %v77 = vld [vmem:[#allocation5 + $0x8] sm:$0xf]
    %v78 = vld [vmem:[#allocation5 + $0xc] sm:$0xf]
    %v83 = vunpack.c.l.b16 %v75
    %v84 = vunpack.c.l.b16 %v76
    %v85 = vunpack.c.l.b16 %v77
    %v86 = vunpack.c.l.b16 %v78
    %v87 = vpack.c.b16 %v84, %v83
    %v88 = vpack.c.b16 %v86, %v85
    %vm91 = vcmask 261120
    %v93 = vsel %vm91, %v74, 0
    %95 = vmatprep.subr.bf16.mxu0 0
    %96 = vmatpush1.bf16.msra.mxu0 0
    %97 = vmatprep.subr.bf16.mxu0 0
    %98 = vmatpush1.bf16.msra.mxu0 0
    %99 = vmatprep.subr.bf16.mxu0 0
    %100 = vmatpush1.bf16.msra.mxu0 0
    %101 = vmatprep.subr.bf16.mxu0 0
    %102 = vmatpush1.bf16.msra.mxu0 0
    %103 = vmatprep.subr.bf16.mxu0 0
    %104 = vmatpush1.bf16.msra.mxu0 0
    %105 = vmatprep.subr.bf16.mxu0 0
    %106 = vmatpush1.bf16.msra.mxu0 0
    %107 = vmatprep.subr.bf16.mxu0 0
    %108 = vmatpush1.bf16.msra.mxu0 %v88
    %109 = vmatprep.subr.bf16.mxu0 0
    %110 = vmatpush1.bf16.msra.mxu0 %v87
    %111 = vmatprep.subr.bf16.mxu0 0
    %112 = vmatpush2.bf16.msra.mxu0 0
    %113 = vmatprep.subr.bf16.mxu0 0
    %114 = vmatpush2.bf16.msra.mxu0 0
    %115 = vmatprep.subr.bf16.mxu0 0
    %116 = vmatpush2.bf16.msra.mxu0 0
    %117 = vmatprep.subr.bf16.mxu0 0
    %118 = vmatpush2.bf16.msra.mxu0 0
    %119 = vmatprep.subr.bf16.mxu0 0
    %120 = vmatpush2.bf16.msra.mxu0 0
    %121 = vmatprep.subr.bf16.mxu0 0
    %122 = vmatpush2.bf16.msra.mxu0 0
    %123 = vmatprep.subr.bf16.mxu0 0
    %124 = vmatpush2.bf16.msra.mxu0 0
    %125 = vmatprep.subr.bf16.mxu0 0
    %126 = vmatpush2.bf16.msra.mxu0 0
    %127 = vmatprep.mubr.bf16.mxu0 0
    %128 = vmatmul.mubr.bf16.gmra.mxu0 %v93
    %v129 = vpop.f32.mrf.mxu0
    %v130 = vadd.f32 0.0, %v129
    %v131 = vpop.f32.mrf.mxu0
    %v132 = vpop.f32.mrf.mxu0
    %v133 = vpop.f32.mrf.mxu0
    %134 = vdwg.mxu0
    %v135 = vld [vmem:[#allocation7] sm:$0xf]
    %v136 = vld [vmem:[#allocation7 + $0x4] sm:$0xf]
    %v137 = vld [vmem:[#allocation7 + $0x8] sm:$0xf]
    %v138 = vld [vmem:[#allocation7 + $0xc] sm:$0xf]
    %v141 = vunpack.c.l.b16 %v72
    %v142 = vunpack.c.l.b16 %v73
    %v143 = vpack.c.b16 %v142, %v141
    %v148 = vunpack.c.l.b16 %v135
    %v149 = vunpack.c.l.b16 %v136
    %v150 = vunpack.c.l.b16 %v137
    %v151 = vunpack.c.l.b16 %v138
    %v152 = vpack.c.b16 %v149, %v148
    %v153 = vpack.c.b16 %v151, %v150
    %v157 = vsel %vm91, %v143, 0
    %159 = vmatprep.subr.bf16.mxu0 0
    %160 = vmatpush1.bf16.msra.mxu0 0
    %161 = vmatprep.subr.bf16.mxu0 0
    %162 = vmatpush1.bf16.msra.mxu0 0
    %163 = vmatprep.subr.bf16.mxu0 0
    %164 = vmatpush1.bf16.msra.mxu0 0
    %165 = vmatprep.subr.bf16.mxu0 0
    %166 = vmatpush1.bf16.msra.mxu0 0
    %167 = vmatprep.subr.bf16.mxu0 0
    %168 = vmatpush1.bf16.msra.mxu0 0
    %169 = vmatprep.subr.bf16.mxu0 0
    %170 = vmatpush1.bf16.msra.mxu0 0
    %171 = vmatprep.subr.bf16.mxu0 0
    %172 = vmatpush1.bf16.msra.mxu0 %v153
    %173 = vmatprep.subr.bf16.mxu0 0
    %174 = vmatpush1.bf16.msra.mxu0 %v152
    %175 = vmatprep.subr.bf16.mxu0 0
    %176 = vmatpush2.bf16.msra.mxu0 0
    %177 = vmatprep.subr.bf16.mxu0 0
    %178 = vmatpush2.bf16.msra.mxu0 0
    %179 = vmatprep.subr.bf16.mxu0 0
    %180 = vmatpush2.bf16.msra.mxu0 0
    %181 = vmatprep.subr.bf16.mxu0 0
    %182 = vmatpush2.bf16.msra.mxu0 0
    %183 = vmatprep.subr.bf16.mxu0 0
    %184 = vmatpush2.bf16.msra.mxu0 0
    %185 = vmatprep.subr.bf16.mxu0 0
    %186 = vmatpush2.bf16.msra.mxu0 0
    %187 = vmatprep.subr.bf16.mxu0 0
    %188 = vmatpush2.bf16.msra.mxu0 0
    %189 = vmatprep.subr.bf16.mxu0 0
    %190 = vmatpush2.bf16.msra.mxu0 0
    %191 = vmatprep.mubr.bf16.mxu0 0
    %192 = vmatmul.mubr.bf16.gmra.mxu0 %v157
    %v193 = vpop.f32.mrf.mxu0
    %v194 = vadd.f32 0.0, %v193
    %v195 = vpop.f32.mrf.mxu0
    %v196 = vpop.f32.mrf.mxu0
    %v197 = vadd.f32 0.0, %v196
    %v198 = vpop.f32.mrf.mxu0
    %199 = vdwg.mxu0
    %v202 = vunpack.c.l.s4 1966171168
    %v203 = vunpack.c.0.s8 %v202
    %v204 = vlaneseq
    %v205 = vshrl.u32 %v204, 7
    %v206 = vsub.s32 %v203, %v205
    %v207 = vrot.slane %v130, %v206
    %v208 = vcombine.high %v207, %v207
    %v210 = vunpack.c.l.s4 1966171168
    %v211 = vunpack.c.0.s8 %v210
    %v212 = vlaneseq
    %v213 = vshrl.u32 %v212, 7
    %v214 = vsub.s32 %v211, %v213
    %v215 = vrot.slane %v207, %v214
    %v217 = vunpack.c.l.s4 1966171168
    %v218 = vunpack.c.0.s8 %v217
    %v219 = vlaneseq
    %v220 = vshrl.u32 %v219, 7
    %v221 = vsub.s32 %v218, %v220
    %v222 = vrot.slane %v208, %v221
    %v223 = vlaneseq
    %v224 = vshrl.u32 %v223, 7
    %v225 = vsub.s32 0, %v224
    %v226 = vrot.slane %v215, %v225
    %v227 = vlaneseq
    %v228 = vshrl.u32 %v227, 7
    %v229 = vsub.s32 0, %v228
    %v230 = vrot.slane %v222, %v229
    %v233 = vadd.f32 %v194, %v226
    %v234 = vadd.f32 %v197, %v230
    %v235 = vld [vmem:[%s5] sm:$0x1]
    %v237 = vlaneseq
    %v238 = vshrl.u32 %v237, 7
    %v239 = vsub.s32 0, %v238
    %v240 = vrot.slane %v235, %v239
    %v242 = vadd.f32 %v233, %v240
    %v243 = vadd.f32 %v234, %v240
    %v244 = vtanh.pop %v242
    %v245 = vtanh.pop %v243
    %v246 = vld [vmem:[%s6] sm:$0x1]
    %v248 = vlaneseq
    %v249 = vshrl.u32 %v248, 7
    %v250 = vsub.s32 0, %v249
    %v251 = vrot.slane %v246, %v250
    %v253 = vmul.f32 %v244, %v251
    %v254 = vmul.f32 %v245, %v251
    %v255 = vsel %vm91, %v253, 0.0
    %256 = vadd.xlane.f32.xlu0 %v255
    %v257 = vpop.xlane.xlu0 %256
    %v258 = vsel %vm91, %v254, 0.0
    %259 = vadd.xlane.f32.xlu0 %v258
    %v260 = vpop.xlane.xlu0 %259
    %v261 = vlaneseq
    %v262 = vand.u32 %v261, 127
    %v263 = vld [vmem:[%s0] sm:$0x3]
    %264 = vset.pattern.permute.xlu0 0
    %265 = vperm.xlu0 %264, %v263
    %v266 = vpop.permute.xlu0 %265
    %vm267 = vcmp.lt.s32.totalorder %v262, %v266
    %v270 = vlaneseq
    %v271 = vshrl.u32 %v270, 7
    %v272 = vsub.s32 %v262, %v271
    %v273 = vrot.slane %v257, %v272
    %v274 = vlaneseq
    %v275 = vshrl.u32 %v274, 7
    %v276 = vsub.s32 %v262, %v275
    %v277 = vrot.slane %v260, %v276
    %vm278 = vcmask 1041409
    %v279 = vsel %vm278, %v277, %v273
    %v281 = vsel %vm267, %v279, -1e+10
    %vm282 = vcmask 58368
    %v283 = vsel %vm282, %v281, -inf
    %284 = vmax.xlane.f32.xlu0 %v283
    %v285 = vpop.xlane.xlu0 %284
    %v286 = vsub.f32 %v281, %v285
    %v287 = vmul.f32 %v286, 1.442695
    %v288 = vpow.pop %v287
    %v289 = vsel %vm282, %v288, 0.0
    %290 = vadd.xlane.f32.xlu0 %v289
    %v291 = vpop.xlane.xlu0 %290
    %v292 = vrcp.pop %v291
    %v293 = vmul.f32 %v288, %v292
    %v294 = vlaneseq
    %v295 = vshrl.u32 %v294, 7
    %v296 = vsub.s32 0, %v295
    %v297 = vrot.slane %v293, %v296
    %299 = vbcast.lane.b32.xlu0 %v297, 256
    %v300 = vpop.permute.xlu0 %299
    %v301 = vlaneseq
    %v302 = vshrl.u32 %v301, 7
    %v303 = vsub.s32 1, %v302
    %v304 = vrot.slane %v293, %v303
    %306 = vbcast.lane.b32.xlu0 %v304, 256
    %v307 = vpop.permute.xlu0 %306
    %v308 = vunpack.c.l.bf16 %v72
    %v309 = vunpack.c.l.bf16 %v73
    %v310 = vmul.f32 %v300, %v308
    %v311 = vmul.f32 %v307, %v309
    %v312 = vsel %vm91, %v310, 0.0
    %v313 = vrot.slane %v312, 4
    %v314 = vadd.f32 %v312, %v313
    %v315 = vrot.slane %v314, 2
    %v316 = vadd.f32 %v314, %v315
    %v317 = vrot.slane %v316, 1
    %v318 = vadd.f32 %v316, %v317
    %v319 = vsel %vm91, %v311, 0.0
    %v320 = vrot.slane %v319, 4
    %v321 = vadd.f32 %v319, %v320
    %v322 = vrot.slane %v321, 2
    %v323 = vadd.f32 %v321, %v322
    %v324 = vrot.slane %v323, 1
    %v325 = vadd.f32 %v323, %v324
    %326 = vst.msk [vmem:[#allocation9] sm:$0x3] %vm282, %v293
    %v329 = vsel %vm278, %v325, %v318
    %vm331 = vcmask 254976
    %332 = vst.msk [vmem:[#allocation8] sm:$0x3] %vm331, %v329
    // Predicated region
    $region42: #{tpu_custom_call.1} parent=1 // pred_check
      _
    $region43: #{tpu_custom_call.1} parent=1 // pred_check_branch
      %334 = sbr.rel (0) target = $region45
    $region44: #{tpu_custom_call.1} parent=1 // pred_region
      %s336 = ssub.s32 32, 32
      %337 = vsyncadd [#allocation4], %s336
      %s339 = sshll.u32 [#allocation8], 4
      %s340 = int_to_ptr.vmem [resolvable:$true] %s339
      %342 = dma.vmem_to_hbm [thread:$0]  %s340, 32, %s7, [#allocation4]
    $region45: #{tpu_custom_call.1} parent=1 // pred_fallthru
      _
    // Predicated region
    $region46: #{tpu_custom_call.1} parent=1 // pred_check
      _
    $region47: #{tpu_custom_call.1} parent=1 // pred_check_branch
      %344 = sbr.rel (0) target = $region49
    $region48: #{tpu_custom_call.1} parent=1 // pred_region
      %s346 = ssub.s32 32, 32
      %347 = vsyncadd [#allocation10], %s346
      %s349 = sshll.u32 [#allocation9], 4
      %s350 = int_to_ptr.vmem [resolvable:$true] %s349
      %352 = dma.vmem_to_hbm [thread:$0]  %s350, 32, %s8, [#allocation10]
    $region49: #{tpu_custom_call.1} parent=1 // pred_fallthru
      _
    // Predicated region
    $region50: #{tpu_custom_call.1} parent=1 // pred_check
      _
    $region51: #{tpu_custom_call.1} parent=1 // pred_check_branch
      %354 = sbr.rel (0) target = $region53
    $region52: #{tpu_custom_call.1} parent=1 // pred_region
      %355 = dma.done [#allocation4], 32
    $region53: #{tpu_custom_call.1} parent=1 // pred_fallthru
      _
    // Predicated region
    $region54: #{tpu_custom_call.1} parent=1 // pred_check
      _
    $region55: #{tpu_custom_call.1} parent=1 // pred_check_branch
      %357 = sbr.rel (0) target = $region57
    $region56: #{tpu_custom_call.1} parent=1 // pred_region
      %358 = dma.done [#allocation10], 32
    $region57: #{tpu_custom_call.1} parent=1 // pred_fallthru
      _
    %359 = vsyncpa [#allocation3], 1
    %360 = vsyncpa [#allocation6], 1
    %361 = vsyncpa [#allocation4], 1
    %362 = vsyncpa [#allocation10], 1

</llo_original>
